<compile_context>
chip_gen: v6e
topology: v6e:2x2x1
jax: 0.10.0
libtpu: 0.0.40
codegen_flags: <defaults>
</compile_context>

<pallas_src>
import functools

import jax
import jax.numpy as jnp
from jax import lax
from jax.experimental import pallas as pl
from jax.experimental.pallas import tpu as pltpu


def _triplet_kernel(margin_ref, a_ref, p_ref, n_ref, loss_ref, acc_ref,
                    *, d_total, tile_d):
    """Processes one (TB, TD) block of anchor / positive / negative."""
    d = pl.program_id(1)
    n_d = pl.num_programs(1)

    @pl.when(d == 0)
    def _():
        acc_ref[...] = jnp.zeros_like(acc_ref)

    a = a_ref[...].astype(jnp.float32)
    p = p_ref[...].astype(jnp.float32)
    n = n_ref[...].astype(jnp.float32)

    d_ap = a - p
    d_an = a - n
    # Fused reduction: AP - AN = sum(d_ap^2 - d_an^2) -> single XLU lane-reduce.
    sq = d_ap * d_ap - d_an * d_an

    rem = d_total % tile_d
    if rem:  # static: partial last feature block -> mask padded columns.
        col = lax.broadcasted_iota(jnp.int32, sq.shape, dimension=1)
        valid = jnp.logical_or(d != n_d - 1, col < rem)
        sq = jnp.where(valid, sq, 0.0)

    acc_ref[...] += jnp.sum(sq, axis=1, keepdims=True)           # (TB, 1) f32

    @pl.when(d == n_d - 1)
    def _():
        margin = margin_ref[0, 0]
        loss = jnp.maximum(acc_ref[...] + margin, 0.0)            # (TB, 1)
        # Lane-layout-aware minor-dim swap to the lane-dense (1, TB) out row.
        loss_ref[...] = pltpu.einshape("ab->ba", loss).astype(loss_ref.dtype)


def _round_down(x, m):
    return (x // m) * m


def _vmem_capacity():
    try:
        return int(pltpu.get_tpu_info().vmem_capacity_bytes)
    except Exception:
        return 64 * 1024 * 1024        # v7x has the smallest per-TC VMEM


def _choose_tiles(B, D, itemsize, buffer_count):
    """Generation-aware tile sizing (VMEM budget + megacore tile count)."""
    budget = int(_vmem_capacity() * 0.45)          # inputs-only budget
    bytes_per_elt = 3 * buffer_count * itemsize    # 3 streamed inputs x buffers

    # Feature tile: full D unless even a 128-row block blows the budget.
    min_tb = min(B, 128)
    if D <= 128 or min_tb * D * bytes_per_elt <= budget:
        td = D
    else:
        td = max(_round_down(budget // (min_tb * bytes_per_elt), 128), 128)
        td = min(td, _round_down(D, 128))

    # Batch tile: VMEM cap AND >=2 (>=4 for larger B) tiles for v7x megacore.
    rows_budget = max(budget // (td * bytes_per_elt), 128)
    if B < 256:
        n_target = 1
    elif B < 512:
        n_target = 2
    else:
        n_target = 4
    if n_target == 1 and B <= rows_budget:
        tb = B                                     # single block == full dims
    else:
        tb = min(-(-B // n_target), rows_budget)
        tb = max(_round_down(tb, 128), 128)
        tb = min(tb, B)
    return tb, td


def triplet_loss(anchor, positive, negative, margin=1.0,
                 tile_b=None, tile_d=None, input_buffer_count=2):
    """Returns (loss_sum: scalar f32, loss: (B,) f32), matching the PyTorch module.

    input_buffer_count=3 is worth sweeping on v5e when per-input blocks are
    small (<~1 MiB); default 2 is the safe, known-good path.
    """
    assert anchor.shape == positive.shape == negative.shape
    assert anchor.ndim == 2
    B, D = anchor.shape
    itemsize = anchor.dtype.itemsize
    buffers = max(int(input_buffer_count), 2)

    tb_auto, td_auto = _choose_tiles(B, D, itemsize, buffers)
    TB = min(tile_b, B) if tile_b is not None else tb_auto
    TD = min(tile_d, D) if tile_d is not None else td_auto
    # TPU block constraints: last dim multiple of 128 or full; batch dim
    # multiple of 8 or full (lane-dense output additionally wants 128-mult TB).
    assert TD == D or TD % 128 == 0, "tile_d must be a multiple of 128 or == D"
    assert TB == B or TB % 128 == 0, "tile_b must be a multiple of 128 or == B"

    grid = (pl.cdiv(B, TB), pl.cdiv(D, TD))

    # Scoped-VMEM limit derived from the actual tiles (+ headroom), clamped to
    # the chip's physical VMEM (validates user-supplied tiles too).
    vmem_cap = _vmem_capacity()
    tile_bytes = 3 * buffers * TB * TD * itemsize          # streamed inputs
    tile_bytes += 2 * 8 * max(TB, 128) * 4                 # (1,TB) out, 2 bufs, padded
    tile_bytes += TB * 128 * 4                             # (TB,1) acc, lane-padded
    vmem_limit = int(tile_bytes * 1.25) + (4 << 20)
    vmem_limit = min(max(vmem_limit, 16 * 1024 * 1024), int(vmem_cap * 0.9))
    assert tile_bytes < vmem_limit, "tile does not fit the VMEM limit"

    spec_kwargs = {}
    if buffers > 2:
        spec_kwargs["pipeline_mode"] = pl.Buffered(buffers)

    def data_spec():
        return pl.BlockSpec((TB, TD), lambda i, d: (i, d), **spec_kwargs)

    kernel = functools.partial(_triplet_kernel, d_total=D, tile_d=TD)
    margin_arr = jnp.full((1, 1), margin, dtype=jnp.float32)

    cost = pl.CostEstimate(
        flops=6 * B * D,
        transcendentals=0,
        bytes_accessed=3 * B * D * itemsize + 4 * B + 4,
    )

    loss_row = pl.pallas_call(
        kernel,
        out_shape=jax.ShapeDtypeStruct((1, B), jnp.float32),
        grid=grid,
        in_specs=[
            pl.BlockSpec(memory_space=pltpu.MemorySpace.SMEM),   # margin scalar
            data_spec(),
            data_spec(),
            data_spec(),
        ],
        out_specs=pl.BlockSpec((1, TB), lambda i, d: (0, i)),
        scratch_shapes=[pltpu.VMEM((TB, 1), jnp.float32)],
        compiler_params=pltpu.CompilerParams(
            dimension_semantics=("parallel", "arbitrary"),
            vmem_limit_bytes=vmem_limit,
        ),
        cost_estimate=cost,
    )(margin_arr, anchor, positive, negative)

    loss = loss_row[0]                 # (B,)
    return jnp.sum(loss), loss


def _reference(anchor, positive, negative, margin):
    a = anchor.astype(jnp.float32)
    p = positive.astype(jnp.float32)
    n = negative.astype(jnp.float32)
    ap = jnp.sum((a - p) ** 2, axis=1)
    an = jnp.sum((a - n) ** 2, axis=1)
    loss = jnp.maximum(ap - an + margin, 0.0)
    return jnp.sum(loss), loss


if __name__ == "__main__":
    key = jax.random.PRNGKey(0)

    def make(key, B, D, dtype=jnp.float32):
        ka, kp, kn, key = jax.random.split(key, 4)
        return (jax.random.normal(ka, (B, D), dtype=dtype),
                jax.random.normal(kp, (B, D), dtype=dtype),
                jax.random.normal(kn, (B, D), dtype=dtype),
                key)

    # Case 1: small shape, single block (block == full array dims).
    a, p, n, key = make(key, 8, 32)
    s, l = triplet_loss(a, p, n, margin=1.0)
    jax.block_until_ready((s, l))
    rs, rl = _reference(a, p, n, 1.0)
    assert l.shape == (8,)
    assert jnp.allclose(l, rl, atol=1e-5, rtol=1e-5)
    assert jnp.allclose(s, rs, atol=1e-4, rtol=1e-5)

    # Case 2: multi-tile batch path with a partial last batch tile.
    a, p, n, key = make(key, 300, 128)
    s, l = triplet_loss(a, p, n, margin=1.0, tile_b=128)
    jax.block_until_ready((s, l))
    rs, rl = _reference(a, p, n, 1.0)
    assert l.shape == (300,)
    assert jnp.allclose(l, rl, atol=1e-4, rtol=1e-5)
    assert jnp.allclose(s, rs, atol=1e-3, rtol=1e-5)

    # Case 3: feature-axis split fallback with a masked partial feature tile.
    a, p, n, key = make(key, 32, 200)
    s, l = triplet_loss(a, p, n, margin=0.5, tile_d=128)
    jax.block_until_ready((s, l))
    rs, rl = _reference(a, p, n, 0.5)
    assert l.shape == (32,)
    assert jnp.allclose(l, rl, atol=1e-4, rtol=1e-5)
    assert jnp.allclose(s, rs, atol=1e-3, rtol=1e-5)

    # Case 4: bf16 inputs end-to-end (f32 accumulation in-kernel).
    a, p, n, key = make(key, 16, 64, dtype=jnp.bfloat16)
    s, l = triplet_loss(a, p, n, margin=1.0)
    jax.block_until_ready((s, l))
    rs, rl = _reference(a, p, n, 1.0)
    assert l.shape == (16,)
    assert jnp.allclose(l, rl, atol=1e-4, rtol=1e-5)
    assert jnp.allclose(s, rs, atol=1e-3, rtol=1e-5)

    print("KERNEL_OK")
</pallas_src>

<mosaic_0001>
module attributes {stable_mosaic.version = 11 : i64} {
  func.func @_triplet_kernel(%arg0: i32, %arg1: i32, %arg2: memref<1x1xf32, #tpu.memory_space<smem>>, %arg3: memref<8x32xf32, #tpu.memory_space<vmem>>, %arg4: memref<8x32xf32, #tpu.memory_space<vmem>>, %arg5: memref<8x32xf32, #tpu.memory_space<vmem>>, %arg6: memref<1x8xf32, #tpu.memory_space<vmem>>, %arg7: memref<8x1xf32, #tpu.memory_space<vmem>>) attributes {dimension_semantics = [#tpu.dimension_semantics<parallel>, #tpu.dimension_semantics<arbitrary>], iteration_bounds = array<i64: 1, 1>, scalar_prefetch = 0 : i64, scratch_operands = 1 : i64, tpu.core_type = #tpu.core_type<tc>, window_params = [{transform_indices = @transform_0, window_bounds = array<i64: 1, 1>}, {transform_indices = @transform_1, window_bounds = array<i64: 8, 32>}, {transform_indices = @transform_2, window_bounds = array<i64: 8, 32>}, {transform_indices = @transform_3, window_bounds = array<i64: 8, 32>}, {transform_indices = @transform_4, window_bounds = array<i64: 1, 8>}]} {
    %c0_i32 = arith.constant 0 : i32
    %0 = arith.cmpi eq, %arg1, %c0_i32 : i32
    %1 = arith.extui %0 : i1 to i32
    %c0_i32_0 = arith.constant 0 : i32
    %2 = arith.cmpi ne, %1, %c0_i32_0 : i32
    scf.if %2 {
      %cst_12 = arith.constant 0.000000e+00 : f32
      %19 = vector.broadcast %cst_12 : f32 to vector<8x1xf32>
      %c0_13 = arith.constant 0 : index
      %c0_14 = arith.constant 0 : index
      %20 = vector.load %arg7[%c0_13, %c0_14] : memref<8x1xf32, #tpu.memory_space<vmem>>, vector<8x1xf32>
      tpu.vector_store %arg7[%c0_13, %c0_14], %19 {strides = array<i32>} : memref<8x1xf32, #tpu.memory_space<vmem>>, vector<8x1xf32>,
    } else {
    }
    %c0 = arith.constant 0 : index
    %c0_1 = arith.constant 0 : index
    %3 = vector.load %arg3[%c0, %c0_1] : memref<8x32xf32, #tpu.memory_space<vmem>>, vector<8x32xf32>
    %c0_2 = arith.constant 0 : index
    %c0_3 = arith.constant 0 : index
    %4 = vector.load %arg4[%c0_2, %c0_3] : memref<8x32xf32, #tpu.memory_space<vmem>>, vector<8x32xf32>
    %c0_4 = arith.constant 0 : index
    %c0_5 = arith.constant 0 : index
    %5 = vector.load %arg5[%c0_4, %c0_5] : memref<8x32xf32, #tpu.memory_space<vmem>>, vector<8x32xf32>
    %6 = arith.subf %3, %4 : vector<8x32xf32>
    %7 = arith.subf %3, %5 : vector<8x32xf32>
    %8 = arith.mulf %6, %6 : vector<8x32xf32>
    %9 = arith.mulf %7, %7 : vector<8x32xf32>
    %10 = arith.subf %8, %9 : vector<8x32xf32>
    %c0_6 = arith.constant 0 : index
    %c0_7 = arith.constant 0 : index
    %11 = vector.load %arg7[%c0_6, %c0_7] : memref<8x1xf32, #tpu.memory_space<vmem>>, vector<8x1xf32>
    %cst = arith.constant dense<0.000000e+00> : vector<8xf32>
    %12 = vector.multi_reduction <add>, %10, %cst [1] : vector<8x32xf32> to vector<8xf32>
    %13 = vector.shape_cast %12 : vector<8xf32> to vector<8x1xf32>
    %14 = arith.addf %11, %13 : vector<8x1xf32>
    %c0_8 = arith.constant 0 : index
    %c0_9 = arith.constant 0 : index
    %15 = vector.load %arg7[%c0_8, %c0_9] : memref<8x1xf32, #tpu.memory_space<vmem>>, vector<8x1xf32>
    tpu.vector_store %arg7[%c0_8, %c0_9], %14 {strides = array<i32>} : memref<8x1xf32, #tpu.memory_space<vmem>>, vector<8x1xf32>,
    %c0_i32_10 = arith.constant 0 : i32
    %16 = arith.cmpi eq, %arg1, %c0_i32_10 : i32
    %17 = arith.extui %16 : i1 to i32
    %c0_i32_11 = arith.constant 0 : i32
    %18 = arith.cmpi ne, %17, %c0_i32_11 : i32
    scf.if %18 {
      %c0_12 = arith.constant 0 : index
      %c0_13 = arith.constant 0 : index
      %19 = memref.load %arg2[%c0_12, %c0_13] : memref<1x1xf32, #tpu.memory_space<smem>>
      %c0_14 = arith.constant 0 : index
      %c0_15 = arith.constant 0 : index
      %20 = vector.load %arg7[%c0_14, %c0_15] : memref<8x1xf32, #tpu.memory_space<vmem>>, vector<8x1xf32>
      %21 = vector.broadcast %19 : f32 to vector<8x1xf32>
      %22 = arith.addf %20, %21 : vector<8x1xf32>
      %cst_16 = arith.constant 0.000000e+00 : f32
      %23 = vector.broadcast %cst_16 : f32 to vector<8x1xf32>
      %24 = arith.maximumf %22, %23 : vector<8x1xf32>
      %25 = tpu.transpose %24, [1, 0] : vector<8x1xf32> -> vector<1x8xf32>
      %c0_17 = arith.constant 0 : index
      %c0_18 = arith.constant 0 : index
      %26 = vector.load %arg6[%c0_17, %c0_18] : memref<1x8xf32, #tpu.memory_space<vmem>>, vector<1x8xf32>
      tpu.vector_store %arg6[%c0_17, %c0_18], %25 {strides = array<i32>} : memref<1x8xf32, #tpu.memory_space<vmem>>, vector<1x8xf32>,
    } else {
    }
    return
  }
  func.func @transform_0(%arg0: i32, %arg1: i32) -> (i32, i32) {
    %c0_i32 = arith.constant 0 : i32
    %c0_i32_0 = arith.constant 0 : i32
    %c0_i32_1 = arith.constant 0 : i32
    return %c0_i32, %c0_i32_0 : i32, i32
  }
  func.func @transform_1(%arg0: i32, %arg1: i32) -> (i32, i32) {
    %c0_i32 = arith.constant 0 : i32
    return %arg0, %arg1 : i32, i32
  }
  func.func @transform_2(%arg0: i32, %arg1: i32) -> (i32, i32) {
    %c0_i32 = arith.constant 0 : i32
    return %arg0, %arg1 : i32, i32
  }
  func.func @transform_3(%arg0: i32, %arg1: i32) -> (i32, i32) {
    %c0_i32 = arith.constant 0 : i32
    return %arg0, %arg1 : i32, i32
  }
  func.func @transform_4(%arg0: i32, %arg1: i32) -> (i32, i32) {
    %c0_i32 = arith.constant 0 : i32
    %c0_i32_0 = arith.constant 0 : i32
    return %c0_i32, %arg0 : i32, i32
  }
}

</mosaic_0001>

<llo_original>
// kernel: tpu_custom_call.1
$region0: #{tpu_custom_call.1}
  #allocation0 [shape = 'u32[]', space=smem, size = 0x4, offset = 0x4, fixed_abs, tag = 'smem constant byte address 0x4 - core index']
  #allocation1 [shape = 'u32[144,128]{1,0:T(1,128)}', space=vmem, size = 0x12000, scoped, tag = 'internal scratch']
  #allocation2 [shape = 'f32[8,1]{1,0:T(8,128)}', space=vmem, size = 0x1000, scoped, tag = 'scratch operand']
  #allocation3 [shape = 'f32[1,1]{1,0:T(1,128)S(6)}', space=smem, size = 0x200, scoped, tag = 'scoped memory for tpu_custom_call.1']
  %s0 = inlined_call_operand.<no memory space> [shape: f32[1,1], index: 0, kind: input, shape index: {}]
  %s1 = inlined_call_operand.hbm [shape: f32[8,32], index: 1, kind: input, shape index: {}]
  %s2 = inlined_call_operand.hbm [shape: f32[8,32], index: 2, kind: input, shape index: {}]
  %s3 = inlined_call_operand.hbm [shape: f32[8,32], index: 3, kind: input, shape index: {}]
  %s4 = inlined_call_operand.hbm [shape: f32[1,8], index: 4, kind: output, shape index: {}]
  %s5 = sld [smem:[#allocation0]]
  $region46: #{tpu_custom_call.1} parent=0
    _
  %s7 = ssub.s32 1, %s5
  %s8 = scalar_select 0, %s7, %s5
  %9 = sst [smem:[#allocation3]] %s0
  $region1: #{tpu_custom_call.1} parent=0
    #allocation4 [shape = 'u8[4096]{0}', space=vmem, size = 0x1000, scoped, tag = 'input window, operand 1, single buffered']
    #allocation5 [shape = 's32[1]{0}', space=sflag, size = 0x4, scoped, tag = 'scoped memory for tpu_custom_call.1']
    #allocation6 [shape = 's32[1]{0}', space=sflag, size = 0x4, scoped, tag = 'scoped memory for tpu_custom_call.1']
    #allocation7 [shape = 'u8[4096]{0}', space=vmem, size = 0x1000, scoped, tag = 'input window, operand 2, single buffered']
    #allocation8 [shape = 's32[1]{0}', space=sflag, size = 0x4, scoped, tag = 'scoped memory for tpu_custom_call.1']
    #allocation9 [shape = 'u8[4096]{0}', space=vmem, size = 0x1000, scoped, tag = 'input window, operand 3, single buffered']
    #allocation10 [shape = 'u8[512]{0}', space=vmem, size = 0x400, scoped, tag = 'output window, operand 0, single buffered']
    %10 = vsyncpa [#allocation5], 0
    %11 = vsyncpa [#allocation8], 0
    %12 = vsyncpa [#allocation6], 0
    // Predicated region
    $region2: #{tpu_custom_call.1} parent=1 // pred_check
      _
    $region3: #{tpu_custom_call.1} parent=1 // pred_check_branch
      %14 = sbr.rel (0) target = $region5
    $region4: #{tpu_custom_call.1} parent=1 // pred_region
      _
    $region5: #{tpu_custom_call.1} parent=1 // pred_fallthru
      _
    // Predicated region
    $region6: #{tpu_custom_call.1} parent=1 // pred_check
      _
    $region7: #{tpu_custom_call.1} parent=1 // pred_check_branch
      %16 = sbr.rel (0) target = $region9
    $region8: #{tpu_custom_call.1} parent=1 // pred_region
      %s18 = ssub.s32 128, 128
      %19 = vsyncadd [#allocation5], %s18
      %s21 = sshll.u32 [#allocation4], 4
      %s22 = int_to_ptr.vmem [resolvable:$true] %s21
      %24 = dma.hbm_to_vmem [thread:$0]  %s1, 128, %s22, [#allocation5]
    $region9: #{tpu_custom_call.1} parent=1 // pred_fallthru
      _
    // Predicated region
    $region10: #{tpu_custom_call.1} parent=1 // pred_check
      _
    $region11: #{tpu_custom_call.1} parent=1 // pred_check_branch
      %26 = sbr.rel (0) target = $region13
    $region12: #{tpu_custom_call.1} parent=1 // pred_region
      %s28 = ssub.s32 128, 128
      %29 = vsyncadd [#allocation8], %s28
      %s31 = sshll.u32 [#allocation7], 4
      %s32 = int_to_ptr.vmem [resolvable:$true] %s31
      %34 = dma.hbm_to_vmem [thread:$0]  %s2, 128, %s32, [#allocation8]
    $region13: #{tpu_custom_call.1} parent=1 // pred_fallthru
      _
    // Predicated region
    $region14: #{tpu_custom_call.1} parent=1 // pred_check
      _
    $region15: #{tpu_custom_call.1} parent=1 // pred_check_branch
      %36 = sbr.rel (0) target = $region17
    $region16: #{tpu_custom_call.1} parent=1 // pred_region
      %s38 = ssub.s32 128, 128
      %39 = vsyncadd [#allocation8], %s38
      %s41 = sshll.u32 [#allocation9], 4
      %s42 = int_to_ptr.vmem [resolvable:$true] %s41
      %44 = dma.hbm_to_vmem [thread:$0]  %s3, 128, %s42, [#allocation8]
    $region17: #{tpu_custom_call.1} parent=1 // pred_fallthru
      _
    // Predicated region
    $region18: #{tpu_custom_call.1} parent=1 // pred_check
      _
    $region19: #{tpu_custom_call.1} parent=1 // pred_check_branch
      %46 = sbr.rel (0) target = $region21
    $region20: #{tpu_custom_call.1} parent=1 // pred_region
      %47 = dma.done [#allocation5], 128
    $region21: #{tpu_custom_call.1} parent=1 // pred_fallthru
      _
    // Predicated region
    $region22: #{tpu_custom_call.1} parent=1 // pred_check
      _
    $region23: #{tpu_custom_call.1} parent=1 // pred_check_branch
      %49 = sbr.rel (0) target = $region25
    $region24: #{tpu_custom_call.1} parent=1 // pred_region
      %50 = dma.done [#allocation8], 128
    $region25: #{tpu_custom_call.1} parent=1 // pred_fallthru
      _
    // Predicated region
    $region26: #{tpu_custom_call.1} parent=1 // pred_check
      _
    $region27: #{tpu_custom_call.1} parent=1 // pred_check_branch
      %52 = sbr.rel (0) target = $region29
    $region28: #{tpu_custom_call.1} parent=1 // pred_region
      %53 = dma.done [#allocation8], 128
    $region29: #{tpu_custom_call.1} parent=1 // pred_fallthru
      _
    %p54 = scmp.eq.s32.totalorder 0, 0
    // Predicated region
    $region30: #{tpu_custom_call.1} parent=1 // pred_check
      %p55 = pneg %p54
    $region31: #{tpu_custom_call.1} parent=1 // pred_check_branch
      %57 = sbr.rel (%p55) target = $region33
    $region32: #{tpu_custom_call.1} parent=1 // pred_region
      %vm58 = vcmask 7168
      %59 = vst.msk [vmem:[#allocation2] sm:$0xff] %vm58, 0.0
    $region33: #{tpu_custom_call.1} parent=1 // pred_fallthru
      _
    %v60 = vld [vmem:[#allocation4] sm:$0xff]
    %v61 = vld [vmem:[#allocation7] sm:$0xff]
    %v62 = vld [vmem:[#allocation9] sm:$0xff]
    %v63 = vsub.f32 %v60, %v61
    %v64 = vsub.f32 %v60, %v62
    %v65 = vmul.f32 %v63, %v63
    %v66 = vmul.f32 %v64, %v64
    %v67 = vsub.f32 %v65, %v66
    %v68 = vld [vmem:[#allocation2] sm:$0xff]
    %vm69 = vcmask 261120
    %v70 = vsel %vm69, %v67, 0.0
    %71 = vadd.xlane.f32.xlu0 %v70
    %v72 = vpop.xlane.xlu0 %71
    %v73 = vadd.f32 %v68, %v72
    %vm74 = vcmask 7168
    %75 = vst.msk [vmem:[#allocation2] sm:$0xff] %vm74, %v73
    // Predicated region
    $region34: #{tpu_custom_call.1} parent=1 // pred_check
      %p76 = pneg %p54
    $region35: #{tpu_custom_call.1} parent=1 // pred_check_branch
      %78 = sbr.rel (%p76) target = $region37
    $region36: #{tpu_custom_call.1} parent=1 // pred_region
      %s79 = sld [smem:[#allocation3]]
      %v80 = vld [vmem:[#allocation2] sm:$0xff]
      %v81 = vstv %s79
      %v82 = vadd.f32 %v80, %v81
      %v83 = vmax.f32 %v82, 0.0
      %84 = vxpose.xlu0.b32.start [1/16] %v83, 128
      %85 = vxpose.xlu0.b32.cont [2/16] 0.0, 128
      %86 = vxpose.xlu0.b32.cont [3/16] 0.0, 128
      %87 = vxpose.xlu0.b32.cont [4/16] 0.0, 128
      %88 = vxpose.xlu0.b32.cont [5/16] 0.0, 128
      %89 = vxpose.xlu0.b32.cont [6/16] 0.0, 128
      %90 = vxpose.xlu0.b32.cont [7/16] 0.0, 128
      %91 = vxpose.xlu0.b32.cont [8/16] 0.0, 128
      %92 = vxpose.xlu0.b32.cont [9/16] 0.0, 128
      %93 = vxpose.xlu0.b32.cont [10/16] 0.0, 128
      %94 = vxpose.xlu0.b32.cont [11/16] 0.0, 128
      %95 = vxpose.xlu0.b32.cont [12/16] 0.0, 128
      %96 = vxpose.xlu0.b32.cont [13/16] 0.0, 128
      %97 = vxpose.xlu0.b32.cont [14/16] 0.0, 128
      %98 = vxpose.xlu0.b32.cont [15/16] 0.0, 128
      %99 = vxpose.xlu0.b32.end [16/16] 0.0, 128
      %v100 = vpop.trf.xlu0
      %v101 = vpop.trf.xlu0
      %v102 = vpop.trf.xlu0
      %v103 = vpop.trf.xlu0
      %v104 = vpop.trf.xlu0
      %v105 = vpop.trf.xlu0
      %v106 = vpop.trf.xlu0
      %v107 = vpop.trf.xlu0
      %v108 = vpop.trf.xlu0
      %v109 = vpop.trf.xlu0
      %v110 = vpop.trf.xlu0
      %v111 = vpop.trf.xlu0
      %v112 = vpop.trf.xlu0
      %v113 = vpop.trf.xlu0
      %v114 = vpop.trf.xlu0
      %v115 = vpop.trf.xlu0
      %vm116 = vcmask 57344
      %117 = vst.msk [vmem:[#allocation10] sm:$0x1] %vm116, %v100
    $region37: #{tpu_custom_call.1} parent=1 // pred_fallthru
      _
    // Predicated region
    $region38: #{tpu_custom_call.1} parent=1 // pred_check
      _
    $region39: #{tpu_custom_call.1} parent=1 // pred_check_branch
      %119 = sbr.rel (0) target = $region41
    $region40: #{tpu_custom_call.1} parent=1 // pred_region
      %s121 = ssub.s32 16, 16
      %122 = vsyncadd [#allocation6], %s121
      %s124 = sshll.u32 [#allocation10], 4
      %s125 = int_to_ptr.vmem [resolvable:$true] %s124
      %127 = dma.vmem_to_hbm [thread:$0]  %s125, 16, %s4, [#allocation6]
    $region41: #{tpu_custom_call.1} parent=1 // pred_fallthru
      _
    // Predicated region
    $region42: #{tpu_custom_call.1} parent=1 // pred_check
      _
    $region43: #{tpu_custom_call.1} parent=1 // pred_check_branch
      %129 = sbr.rel (0) target = $region45
    $region44: #{tpu_custom_call.1} parent=1 // pred_region
      %130 = dma.done [#allocation6], 16
    $region45: #{tpu_custom_call.1} parent=1 // pred_fallthru
      _
    %131 = vsyncpa [#allocation5], 1
    %132 = vsyncpa [#allocation8], 1
    %133 = vsyncpa [#allocation6], 1

</llo_original>
